<compile_context>
chip_gen: v6e
topology: v6e:2x2x1
jax: 0.10.0
libtpu: 0.0.40
codegen_flags: <defaults>
</compile_context>

<pallas_src>
import jax
import jax.numpy as jnp
from jax import lax
from jax.experimental import pallas as pl
from jax.experimental.pallas import tpu as pltpu


def mlp_policy_kernel(x_ref, w1_ref, b1_ref, w2_ref, b2_ref, w3_ref, b3_ref, o_ref):
    # x block arrives untransposed: (TILE_B, obs_dim).
    x = x_ref[...]

    # Layer 1: contract the obs_dim (last) dims -> lane-dense (16, TILE_B).
    h1 = lax.dot_general(
        w1_ref[...], x,                       # (16, obs_dim) · (TILE_B, obs_dim)
        dimension_numbers=(((1,), (1,)), ((), ())),
        preferred_element_type=jnp.float32,
    ) + b1_ref[...]
    h1 = jnp.maximum(h1, 0.0)

    # Layer 2: (8, 16) @ (16, TILE_B) -> (8, TILE_B), bias, ReLU.
    h2 = jnp.dot(w2_ref[...], h1, preferred_element_type=jnp.float32) + b2_ref[...]
    h2 = jnp.maximum(h2, 0.0)

    # Layer 3: (action_dim, 8) @ (8, TILE_B) -> (action_dim, TILE_B), bias.
    logits = jnp.dot(w3_ref[...], h2, preferred_element_type=jnp.float32) + b3_ref[...]

    # Softmax over the action dim (sublane axis): per-lane VPU work; exact
    # divide (review: approx reciprocal buys nothing here and hurts accuracy).
    m = jnp.max(logits, axis=0, keepdims=True)
    e = jnp.exp(logits - m)
    denom = jnp.sum(e, axis=0, keepdims=True)
    o_ref[...] = (e / denom).astype(o_ref.dtype)


def _round_up(x, m):
    return ((x + m - 1) // m) * m


def mlp_policy_relu(obs, params, *, max_tile_b=4096):
    """obs: (B, obs_dim) float32. params: dict of w1,b1,w2,b2,w3,b3 (weights stored (in,out))."""
    B, obs_dim = obs.shape
    action_dim = params["w3"].shape[1]

    # Batch tile: multiple of 256 (full-width MXU on v6e/v7x), capped at 4096
    # so the lane-padded (tile_b, obs_dim) input block stays small in VMEM.
    tile_b = min(_round_up(B, 256), _round_up(max_tile_b, 256))
    grid = (pl.cdiv(B, tile_b),)

    # Tiny, once-per-call layout plumbing on the weights only (224 floats).
    w1T = params["w1"].T            # (16, obs_dim)
    w2T = params["w2"].T            # (8, 16)
    w3T = params["w3"].T            # (action_dim, 8)
    b1c = params["b1"].reshape(-1, 1)
    b2c = params["b2"].reshape(-1, 1)
    b3c = params["b3"].reshape(-1, 1)

    const = lambda i: (0, 0)        # weights/biases: DMA once, resident across batch tiles

    outT = pl.pallas_call(
        mlp_policy_kernel,
        out_shape=jax.ShapeDtypeStruct((action_dim, B), jnp.float32),
        grid=grid,
        in_specs=[
            pl.BlockSpec((tile_b, obs_dim), lambda i: (i, 0)),   # obs, untransposed
            pl.BlockSpec(w1T.shape, const),
            pl.BlockSpec(b1c.shape, const),
            pl.BlockSpec(w2T.shape, const),
            pl.BlockSpec(b2c.shape, const),
            pl.BlockSpec(w3T.shape, const),
            pl.BlockSpec(b3c.shape, const),
        ],
        out_specs=pl.BlockSpec((action_dim, tile_b), lambda i: (0, i)),  # lane-dense
        compiler_params=pltpu.CompilerParams(dimension_semantics=("parallel",)),
    )(obs, w1T, b1c, w2T, b2c, w3T, b3c)

    # Back to the PyTorch layout (B, action_dim); (action_dim, B) is tiny.
    return outT.T


def init_params(key, obs_dim, action_dim):
    """PyTorch nn.Linear default init: U(-1/sqrt(fan_in), 1/sqrt(fan_in))."""
    def linear(k, fan_in, fan_out):
        kw, kb = jax.random.split(k)
        bound = 1.0 / (fan_in ** 0.5)
        w = jax.random.uniform(kw, (fan_in, fan_out), jnp.float32, -bound, bound)
        b = jax.random.uniform(kb, (fan_out,), jnp.float32, -bound, bound)
        return w, b

    k1, k2, k3 = jax.random.split(key, 3)
    w1, b1 = linear(k1, obs_dim, 16)
    w2, b2 = linear(k2, 16, 8)
    w3, b3 = linear(k3, 8, action_dim)
    return {"w1": w1, "b1": b1, "w2": w2, "b2": b2, "w3": w3, "b3": b3}


def reference(obs, p, *, precision=None):
    h1 = jnp.maximum(jnp.dot(obs, p["w1"], precision=precision) + p["b1"], 0.0)
    h2 = jnp.maximum(jnp.dot(h1, p["w2"], precision=precision) + p["b2"], 0.0)
    logits = jnp.dot(h2, p["w3"], precision=precision) + p["b3"]
    return jax.nn.softmax(logits, axis=-1)


def assert_close_to_reference(out, obs, params, *, atol=1e-3, rtol=1e-3):
    # Depending on backend / precision mode, f32 matmuls may run as a single
    # bf16 MXU pass (XLA DEFAULT) or as multi-pass ~f32 accuracy (Mosaic /
    # HIGHEST).  Accept a match against either reference; both are the same math.
    ref_lo = reference(obs, params)
    ref_hi = reference(obs, params, precision=jax.lax.Precision.HIGHEST)
    ok = bool(jnp.allclose(out, ref_lo, atol=atol, rtol=rtol)) or \
         bool(jnp.allclose(out, ref_hi, atol=atol, rtol=rtol))
    assert ok, (float(jnp.max(jnp.abs(out - ref_lo))),
                float(jnp.max(jnp.abs(out - ref_hi))))
    # Exact softmax divide -> rows sum to 1 to f32 rounding.
    assert bool(jnp.allclose(jnp.sum(out, axis=-1), 1.0, atol=1e-5))
    assert bool(jnp.all(out >= 0.0)) and bool(jnp.all(out <= 1.0))


if __name__ == "__main__":
    key = jax.random.PRNGKey(0)
    k_obs, k_obs2, k_param = jax.random.split(key, 3)

    # Iterated prisoner's dilemma: obs_dim=5, action_dim=2 (cooperate / defect).
    obs_dim, action_dim = 5, 2
    params = init_params(k_param, obs_dim, action_dim)

    run = jax.jit(mlp_policy_relu, static_argnames=("max_tile_b",))

    # Small batch: single (clipped) grid step.
    B = 8
    obs = jax.random.normal(k_obs, (B, obs_dim), dtype=jnp.float32)
    out = jax.block_until_ready(run(obs, params))
    assert out.shape == (B, action_dim)
    assert_close_to_reference(out, obs, params)

    # Larger, non-multiple batch: single 1024-wide tile with a partial block.
    B2 = 1000
    obs2 = jax.random.normal(k_obs2, (B2, obs_dim), dtype=jnp.float32)
    out2 = jax.block_until_ready(run(obs2, params))
    assert out2.shape == (B2, action_dim)
    assert_close_to_reference(out2, obs2, params)

    # Force a multi-step grid + partial last block (1000 = 3*256 + 232).
    out3 = jax.block_until_ready(run(obs2, params, max_tile_b=256))
    assert out3.shape == (B2, action_dim)
    assert_close_to_reference(out3, obs2, params)

    print("KERNEL_OK")
</pallas_src>

<mosaic_0001>
module attributes {stable_mosaic.version = 11 : i64} {
  func.func @mlp_policy_kernel(%arg0: i32, %arg1: memref<256x5xf32, #tpu.memory_space<vmem>>, %arg2: memref<16x5xf32, #tpu.memory_space<vmem>>, %arg3: memref<16x1xf32, #tpu.memory_space<vmem>>, %arg4: memref<8x16xf32, #tpu.memory_space<vmem>>, %arg5: memref<8x1xf32, #tpu.memory_space<vmem>>, %arg6: memref<2x8xf32, #tpu.memory_space<vmem>>, %arg7: memref<2x1xf32, #tpu.memory_space<vmem>>, %arg8: memref<2x256xf32, #tpu.memory_space<vmem>>) attributes {dimension_semantics = [#tpu.dimension_semantics<parallel>], iteration_bounds = array<i64: 1>, scalar_prefetch = 0 : i64, scratch_operands = 0 : i64, tpu.core_type = #tpu.core_type<tc>, window_params = [{transform_indices = @transform_0, window_bounds = array<i64: 256, 5>}, {pipeline_mode = #tpu.pipeline_mode<synchronous>, transform_indices = @transform_1, window_bounds = array<i64: 16, 5>}, {pipeline_mode = #tpu.pipeline_mode<synchronous>, transform_indices = @transform_2, window_bounds = array<i64: 16, 1>}, {pipeline_mode = #tpu.pipeline_mode<synchronous>, transform_indices = @transform_3, window_bounds = array<i64: 8, 16>}, {pipeline_mode = #tpu.pipeline_mode<synchronous>, transform_indices = @transform_4, window_bounds = array<i64: 8, 1>}, {pipeline_mode = #tpu.pipeline_mode<synchronous>, transform_indices = @transform_5, window_bounds = array<i64: 2, 8>}, {pipeline_mode = #tpu.pipeline_mode<synchronous>, transform_indices = @transform_6, window_bounds = array<i64: 2, 1>}, {transform_indices = @transform_7, window_bounds = array<i64: 2, 256>}]} {
    %c0 = arith.constant 0 : index
    %c0_0 = arith.constant 0 : index
    %0 = vector.load %arg1[%c0, %c0_0] : memref<256x5xf32, #tpu.memory_space<vmem>>, vector<256x5xf32>
    %c0_1 = arith.constant 0 : index
    %c0_2 = arith.constant 0 : index
    %1 = vector.load %arg2[%c0_1, %c0_2] : memref<16x5xf32, #tpu.memory_space<vmem>>, vector<16x5xf32>
    %cst = arith.constant dense<0.000000e+00> : vector<16x256xf32>
    %2 = tpu.matmul %1, %0, %cst {dimension_numbers = #tpu.dot_dimension_numbers<[1], [1], [0], [0], [0, 0, 1, 0], [], []>} : vector<16x5xf32>, vector<256x5xf32>, vector<16x256xf32> -> vector<16x256xf32>
    %c0_3 = arith.constant 0 : index
    %c0_4 = arith.constant 0 : index
    %3 = vector.load %arg3[%c0_3, %c0_4] : memref<16x1xf32, #tpu.memory_space<vmem>>, vector<16x1xf32>
    %4 = vector.broadcast %3 : vector<16x1xf32> to vector<16x256xf32>
    %5 = arith.addf %2, %4 : vector<16x256xf32>
    %cst_5 = arith.constant 0.000000e+00 : f32
    %6 = vector.broadcast %cst_5 : f32 to vector<16x256xf32>
    %7 = arith.maximumf %5, %6 : vector<16x256xf32>
    %c0_6 = arith.constant 0 : index
    %c0_7 = arith.constant 0 : index
    %8 = vector.load %arg4[%c0_6, %c0_7] : memref<8x16xf32, #tpu.memory_space<vmem>>, vector<8x16xf32>
    %cst_8 = arith.constant dense<0.000000e+00> : vector<8x256xf32>
    %9 = tpu.matmul %8, %7, %cst_8 {dimension_numbers = #tpu.dot_dimension_numbers<[1], [0], [0], [1], [0, 0, 1, 1], [], []>} : vector<8x16xf32>, vector<16x256xf32>, vector<8x256xf32> -> vector<8x256xf32>
    %c0_9 = arith.constant 0 : index
    %c0_10 = arith.constant 0 : index
    %10 = vector.load %arg5[%c0_9, %c0_10] : memref<8x1xf32, #tpu.memory_space<vmem>>, vector<8x1xf32>
    %11 = vector.broadcast %10 : vector<8x1xf32> to vector<8x256xf32>
    %12 = arith.addf %9, %11 : vector<8x256xf32>
    %cst_11 = arith.constant 0.000000e+00 : f32
    %13 = vector.broadcast %cst_11 : f32 to vector<8x256xf32>
    %14 = arith.maximumf %12, %13 : vector<8x256xf32>
    %c0_12 = arith.constant 0 : index
    %c0_13 = arith.constant 0 : index
    %15 = vector.load %arg6[%c0_12, %c0_13] : memref<2x8xf32, #tpu.memory_space<vmem>>, vector<2x8xf32>
    %cst_14 = arith.constant dense<0.000000e+00> : vector<2x256xf32>
    %16 = tpu.matmul %15, %14, %cst_14 {dimension_numbers = #tpu.dot_dimension_numbers<[1], [0], [0], [1], [0, 0, 1, 1], [], []>} : vector<2x8xf32>, vector<8x256xf32>, vector<2x256xf32> -> vector<2x256xf32>
    %c0_15 = arith.constant 0 : index
    %c0_16 = arith.constant 0 : index
    %17 = vector.load %arg7[%c0_15, %c0_16] : memref<2x1xf32, #tpu.memory_space<vmem>>, vector<2x1xf32>
    %18 = vector.broadcast %17 : vector<2x1xf32> to vector<2x256xf32>
    %19 = arith.addf %16, %18 : vector<2x256xf32>
    %cst_17 = arith.constant dense<0xFF800000> : vector<256xf32>
    %20 = vector.multi_reduction <maximumf>, %19, %cst_17 [0] : vector<2x256xf32> to vector<256xf32>
    %21 = vector.shape_cast %20 : vector<256xf32> to vector<1x256xf32>
    %22 = vector.broadcast %21 : vector<1x256xf32> to vector<2x256xf32>
    %23 = arith.subf %19, %22 : vector<2x256xf32>
    %24 = math.exp %23 : vector<2x256xf32>
    %cst_18 = arith.constant dense<0.000000e+00> : vector<256xf32>
    %25 = vector.multi_reduction <add>, %24, %cst_18 [0] : vector<2x256xf32> to vector<256xf32>
    %26 = vector.shape_cast %25 : vector<256xf32> to vector<1x256xf32>
    %27 = vector.broadcast %26 : vector<1x256xf32> to vector<2x256xf32>
    %28 = arith.divf %24, %27 : vector<2x256xf32>
    %c0_19 = arith.constant 0 : index
    %c0_20 = arith.constant 0 : index
    %29 = vector.load %arg8[%c0_19, %c0_20] : memref<2x256xf32, #tpu.memory_space<vmem>>, vector<2x256xf32>
    tpu.vector_store %arg8[%c0_19, %c0_20], %28 {strides = array<i32>} : memref<2x256xf32, #tpu.memory_space<vmem>>, vector<2x256xf32>,
    return
  }
  func.func @transform_0(%arg0: i32) -> (i32, i32) {
    %c0_i32 = arith.constant 0 : i32
    %c0_i32_0 = arith.constant 0 : i32
    return %arg0, %c0_i32 : i32, i32
  }
  func.func @transform_1(%arg0: i32) -> (i32, i32) {
    %c0_i32 = arith.constant 0 : i32
    %c0_i32_0 = arith.constant 0 : i32
    %c0_i32_1 = arith.constant 0 : i32
    return %c0_i32, %c0_i32_0 : i32, i32
  }
  func.func @transform_2(%arg0: i32) -> (i32, i32) {
    %c0_i32 = arith.constant 0 : i32
    %c0_i32_0 = arith.constant 0 : i32
    %c0_i32_1 = arith.constant 0 : i32
    return %c0_i32, %c0_i32_0 : i32, i32
  }
  func.func @transform_3(%arg0: i32) -> (i32, i32) {
    %c0_i32 = arith.constant 0 : i32
    %c0_i32_0 = arith.constant 0 : i32
    %c0_i32_1 = arith.constant 0 : i32
    return %c0_i32, %c0_i32_0 : i32, i32
  }
  func.func @transform_4(%arg0: i32) -> (i32, i32) {
    %c0_i32 = arith.constant 0 : i32
    %c0_i32_0 = arith.constant 0 : i32
    %c0_i32_1 = arith.constant 0 : i32
    return %c0_i32, %c0_i32_0 : i32, i32
  }
  func.func @transform_5(%arg0: i32) -> (i32, i32) {
    %c0_i32 = arith.constant 0 : i32
    %c0_i32_0 = arith.constant 0 : i32
    %c0_i32_1 = arith.constant 0 : i32
    return %c0_i32, %c0_i32_0 : i32, i32
  }
  func.func @transform_6(%arg0: i32) -> (i32, i32) {
    %c0_i32 = arith.constant 0 : i32
    %c0_i32_0 = arith.constant 0 : i32
    %c0_i32_1 = arith.constant 0 : i32
    return %c0_i32, %c0_i32_0 : i32, i32
  }
  func.func @transform_7(%arg0: i32) -> (i32, i32) {
    %c0_i32 = arith.constant 0 : i32
    %c0_i32_0 = arith.constant 0 : i32
    return %c0_i32, %arg0 : i32, i32
  }
}

</mosaic_0001>

<llo_original>
// kernel: mlp_policy_relu.1
$region0: #{mlp_policy_relu.1}
  #allocation0 [shape = 'u32[]', space=smem, size = 0x4, offset = 0x4, fixed_abs, tag = 'smem constant byte address 0x4 - core index']
  #allocation1 [shape = 'u32[144,128]{1,0:T(1,128)}', space=vmem, size = 0x12000, scoped, tag = 'internal scratch']
  %s0 = inlined_call_operand.vmem [shape: f32[8,5], index: 0, kind: input, shape index: {}]
  %s1 = inlined_call_operand.vmem [shape: f32[16,5], index: 1, kind: input, shape index: {}]
  %s2 = inlined_call_operand.vmem [shape: f32[16,1], index: 2, kind: input, shape index: {}]
  %s3 = inlined_call_operand.vmem [shape: f32[8,16], index: 3, kind: input, shape index: {}]
  %s4 = inlined_call_operand.vmem [shape: f32[8,1], index: 4, kind: input, shape index: {}]
  %s5 = inlined_call_operand.vmem [shape: f32[2,8], index: 5, kind: input, shape index: {}]
  %s6 = inlined_call_operand.vmem [shape: f32[2,1], index: 6, kind: input, shape index: {}]
  %s7 = inlined_call_operand.hbm [shape: f32[2,8], index: 7, kind: output, shape index: {}]
  %s8 = sld [smem:[#allocation0]]
  $region38: #{mlp_policy_relu.1} parent=0
    _
  %s10 = ssub.s32 1, %s8
  %s11 = scalar_select 0, %s10, %s8
  $region1: #{mlp_policy_relu.1} parent=0
    #allocation2 [shape = 'u8[2048]{0}', space=vmem, size = 0x800, scoped, tag = 'output window, operand 0, single buffered']
    #allocation3 [shape = 's32[1]{0}', space=sflag, size = 0x4, scoped, tag = 'scoped memory for mlp_policy_relu.1']
    %12 = vsyncpa [#allocation3], 0
    // Predicated region
    $region2: #{mlp_policy_relu.1} parent=1 // pred_check
      _
    $region3: #{mlp_policy_relu.1} parent=1 // pred_check_branch
      %14 = sbr.rel (0) target = $region5
    $region4: #{mlp_policy_relu.1} parent=1 // pred_region
      _
    $region5: #{mlp_policy_relu.1} parent=1 // pred_fallthru
      _
    // Predicated region
    $region6: #{mlp_policy_relu.1} parent=1 // pred_check
      _
    $region7: #{mlp_policy_relu.1} parent=1 // pred_check_branch
      %16 = sbr.rel (0) target = $region9
    $region8: #{mlp_policy_relu.1} parent=1 // pred_region
      _
    $region9: #{mlp_policy_relu.1} parent=1 // pred_fallthru
      _
    // Predicated region
    $region10: #{mlp_policy_relu.1} parent=1 // pred_check
      _
    $region11: #{mlp_policy_relu.1} parent=1 // pred_check_branch
      %18 = sbr.rel (0) target = $region13
    $region12: #{mlp_policy_relu.1} parent=1 // pred_region
      _
    $region13: #{mlp_policy_relu.1} parent=1 // pred_fallthru
      _
    // Predicated region
    $region14: #{mlp_policy_relu.1} parent=1 // pred_check
      _
    $region15: #{mlp_policy_relu.1} parent=1 // pred_check_branch
      %20 = sbr.rel (0) target = $region17
    $region16: #{mlp_policy_relu.1} parent=1 // pred_region
      _
    $region17: #{mlp_policy_relu.1} parent=1 // pred_fallthru
      _
    // Predicated region
    $region18: #{mlp_policy_relu.1} parent=1 // pred_check
      _
    $region19: #{mlp_policy_relu.1} parent=1 // pred_check_branch
      %22 = sbr.rel (0) target = $region21
    $region20: #{mlp_policy_relu.1} parent=1 // pred_region
      _
    $region21: #{mlp_policy_relu.1} parent=1 // pred_fallthru
      _
    // Predicated region
    $region22: #{mlp_policy_relu.1} parent=1 // pred_check
      _
    $region23: #{mlp_policy_relu.1} parent=1 // pred_check_branch
      %24 = sbr.rel (0) target = $region25
    $region24: #{mlp_policy_relu.1} parent=1 // pred_region
      _
    $region25: #{mlp_policy_relu.1} parent=1 // pred_fallthru
      _
    // Predicated region
    $region26: #{mlp_policy_relu.1} parent=1 // pred_check
      _
    $region27: #{mlp_policy_relu.1} parent=1 // pred_check_branch
      %26 = sbr.rel (0) target = $region29
    $region28: #{mlp_policy_relu.1} parent=1 // pred_region
      _
    $region29: #{mlp_policy_relu.1} parent=1 // pred_fallthru
      _
    %v27 = vld [vmem:[%s0] sm:$0xff]
    %v28 = vld [vmem:[%s0 + $0x8] sm:$0xff]
    %v29 = vld [vmem:[%s0 + $0x10] sm:$0xff]
    %v30 = vld [vmem:[%s0 + $0x18] sm:$0xff]
    %v31 = vld [vmem:[%s0 + $0x20] sm:$0xff]
    %v32 = vld [vmem:[%s0 + $0x28] sm:$0xff]
    %v33 = vld [vmem:[%s0 + $0x30] sm:$0xff]
    %v34 = vld [vmem:[%s0 + $0x38] sm:$0xff]
    %v35 = vld [vmem:[%s0 + $0x40] sm:$0xff]
    %v36 = vld [vmem:[%s0 + $0x48] sm:$0xff]
    %v37 = vld [vmem:[%s0 + $0x50] sm:$0xff]
    %v38 = vld [vmem:[%s0 + $0x58] sm:$0xff]
    %v39 = vld [vmem:[%s0 + $0x60] sm:$0xff]
    %v40 = vld [vmem:[%s0 + $0x68] sm:$0xff]
    %v41 = vld [vmem:[%s0 + $0x70] sm:$0xff]
    %v42 = vld [vmem:[%s0 + $0x78] sm:$0xff]
    %v43 = vld [vmem:[%s0 + $0x80] sm:$0xff]
    %v44 = vld [vmem:[%s0 + $0x88] sm:$0xff]
    %v45 = vld [vmem:[%s0 + $0x90] sm:$0xff]
    %v46 = vld [vmem:[%s0 + $0x98] sm:$0xff]
    %v47 = vld [vmem:[%s0 + $0xa0] sm:$0xff]
    %v48 = vld [vmem:[%s0 + $0xa8] sm:$0xff]
    %v49 = vld [vmem:[%s0 + $0xb0] sm:$0xff]
    %v50 = vld [vmem:[%s0 + $0xb8] sm:$0xff]
    %v51 = vld [vmem:[%s0 + $0xc0] sm:$0xff]
    %v52 = vld [vmem:[%s0 + $0xc8] sm:$0xff]
    %v53 = vld [vmem:[%s0 + $0xd0] sm:$0xff]
    %v54 = vld [vmem:[%s0 + $0xd8] sm:$0xff]
    %v55 = vld [vmem:[%s0 + $0xe0] sm:$0xff]
    %v56 = vld [vmem:[%s0 + $0xe8] sm:$0xff]
    %v57 = vld [vmem:[%s0 + $0xf0] sm:$0xff]
    %v58 = vld [vmem:[%s0 + $0xf8] sm:$0xff]
    %v59 = vld [vmem:[%s1] sm:$0xff]
    %v60 = vld [vmem:[%s1 + $0x8] sm:$0xff]
    %v61 = vld [vmem:[%s2] sm:$0xff]
    %v62 = vld [vmem:[%s2 + $0x8] sm:$0xff]
    %64 = vset.pattern.permute.xlu0 0
    %65 = vperm.xlu0 %64, %v61
    %v66 = vpop.permute.xlu0 %65
    %69 = vset.pattern.permute.xlu0 0
    %70 = vperm.xlu0 %69, %v62
    %v71 = vpop.permute.xlu0 %70
    %vm73 = vcmask 39936
    %v75 = vsel %vm73, %v59, 0
    %v78 = vsel %vm73, %v60, 0
    %v81 = vsel %vm73, %v27, 0
    %v84 = vsel %vm73, %v28, 0
    %v87 = vsel %vm73, %v29, 0
    %v90 = vsel %vm73, %v30, 0
    %v93 = vsel %vm73, %v31, 0
    %v96 = vsel %vm73, %v32, 0
    %v99 = vsel %vm73, %v33, 0
    %v102 = vsel %vm73, %v34, 0
    %v105 = vsel %vm73, %v35, 0
    %v108 = vsel %vm73, %v36, 0
    %v111 = vsel %vm73, %v37, 0
    %v114 = vsel %vm73, %v38, 0
    %v117 = vsel %vm73, %v39, 0
    %v120 = vsel %vm73, %v40, 0
    %v123 = vsel %vm73, %v41, 0
    %v126 = vsel %vm73, %v42, 0
    %v129 = vsel %vm73, %v43, 0
    %v132 = vsel %vm73, %v44, 0
    %v135 = vsel %vm73, %v45, 0
    %v138 = vsel %vm73, %v46, 0
    %v141 = vsel %vm73, %v47, 0
    %v144 = vsel %vm73, %v48, 0
    %v147 = vsel %vm73, %v49, 0
    %v150 = vsel %vm73, %v50, 0
    %v153 = vsel %vm73, %v51, 0
    %v156 = vsel %vm73, %v52, 0
    %v159 = vsel %vm73, %v53, 0
    %v162 = vsel %vm73, %v54, 0
    %v165 = vsel %vm73, %v55, 0
    %v168 = vsel %vm73, %v56, 0
    %v171 = vsel %vm73, %v57, 0
    %v174 = vsel %vm73, %v58, 0
    %176 = vmatprep.subr.mxu0 0.0
    %177 = vmatpush1.xpose.msra.mxu0 %v126
    %178 = vmatprep.subr.mxu0 0.0
    %179 = vmatpush1.xpose.msra.mxu0 %v123
    %180 = vmatprep.subr.mxu0 0.0
    %181 = vmatpush1.xpose.msra.mxu0 %v120
    %182 = vmatprep.subr.mxu0 0.0
    %183 = vmatpush1.xpose.msra.mxu0 %v117
    %184 = vmatprep.subr.mxu0 0.0
    %185 = vmatpush1.xpose.msra.mxu0 %v114
    %186 = vmatprep.subr.mxu0 0.0
    %187 = vmatpush1.xpose.msra.mxu0 %v111
    %188 = vmatprep.subr.mxu0 0.0
    %189 = vmatpush1.xpose.msra.mxu0 %v108
    %190 = vmatprep.subr.mxu0 0.0
    %191 = vmatpush1.xpose.msra.mxu0 %v105
    %192 = vmatprep.subr.mxu0 0.0
    %193 = vmatpush1.xpose.msra.mxu0 %v102
    %194 = vmatprep.subr.mxu0 0.0
    %195 = vmatpush1.xpose.msra.mxu0 %v99
    %196 = vmatprep.subr.mxu0 0.0
    %197 = vmatpush1.xpose.msra.mxu0 %v96
    %198 = vmatprep.subr.mxu0 0.0
    %199 = vmatpush1.xpose.msra.mxu0 %v93
    %200 = vmatprep.subr.mxu0 0.0
    %201 = vmatpush1.xpose.msra.mxu0 %v90
    %202 = vmatprep.subr.mxu0 0.0
    %203 = vmatpush1.xpose.msra.mxu0 %v87
    %204 = vmatprep.subr.mxu0 0.0
    %205 = vmatpush1.xpose.msra.mxu0 %v84
    %206 = vmatprep.subr.mxu0 0.0
    %207 = vmatpush1.xpose.msra.mxu0 %v81
    %208 = vmatprep.subr.mxu0 0.0
    %209 = vmatpush2.xpose.msra.mxu0 %v174
    %210 = vmatprep.subr.mxu0 0.0
    %211 = vmatpush2.xpose.msra.mxu0 %v171
    %212 = vmatprep.subr.mxu0 0.0
    %213 = vmatpush2.xpose.msra.mxu0 %v168
    %214 = vmatprep.subr.mxu0 0.0
    %215 = vmatpush2.xpose.msra.mxu0 %v165
    %216 = vmatprep.subr.mxu0 0.0
    %217 = vmatpush2.xpose.msra.mxu0 %v162
    %218 = vmatprep.subr.mxu0 0.0
    %219 = vmatpush2.xpose.msra.mxu0 %v159
    %220 = vmatprep.subr.mxu0 0.0
    %221 = vmatpush2.xpose.msra.mxu0 %v156
    %222 = vmatprep.subr.mxu0 0.0
    %223 = vmatpush2.xpose.msra.mxu0 %v153
    %224 = vmatprep.subr.mxu0 0.0
    %225 = vmatpush2.xpose.msra.mxu0 %v150
    %226 = vmatprep.subr.mxu0 0.0
    %227 = vmatpush2.xpose.msra.mxu0 %v147
    %228 = vmatprep.subr.mxu0 0.0
    %229 = vmatpush2.xpose.msra.mxu0 %v144
    %230 = vmatprep.subr.mxu0 0.0
    %231 = vmatpush2.xpose.msra.mxu0 %v141
    %232 = vmatprep.subr.mxu0 0.0
    %233 = vmatpush2.xpose.msra.mxu0 %v138
    %234 = vmatprep.subr.mxu0 0.0
    %235 = vmatpush2.xpose.msra.mxu0 %v135
    %236 = vmatprep.subr.mxu0 0.0
    %237 = vmatpush2.xpose.msra.mxu0 %v132
    %238 = vmatprep.subr.mxu0 0.0
    %239 = vmatpush2.xpose.msra.mxu0 %v129
    %240 = vmatprep.mubr.f32.mxu0 0.0
    %241 = vmatmul.mubr.f32.gmra.mxu0 %v75
    %v242 = vpop.f32.mrf.mxu0
    %v243 = vadd.f32 %v66, %v242
    %v244 = vpop.f32.mrf.mxu0
    %v245 = vadd.f32 %v66, %v244
    %246 = vmatprep.mubr.f32.mxu0 0.0
    %247 = vmatmul.mubr.f32.gmra.mxu0 %v78
    %v248 = vpop.f32.mrf.mxu0
    %v249 = vadd.f32 %v71, %v248
    %v250 = vpop.f32.mrf.mxu0
    %v251 = vadd.f32 %v71, %v250
    %252 = vdwg.mxu0
    %v253 = vmax.f32 %v243, 0.0
    %v254 = vmax.f32 %v245, 0.0
    %v255 = vmax.f32 %v249, 0.0
    %v256 = vmax.f32 %v251, 0.0
    %v257 = vld [vmem:[%s3] sm:$0xff]
    %v258 = vld [vmem:[%s4] sm:$0xff]
    %260 = vset.pattern.permute.xlu0 0
    %261 = vperm.xlu0 %260, %v258
    %v262 = vpop.permute.xlu0 %261
    %vm264 = vcmask 130048
    %v266 = vsel %vm264, %v257, 0
    %268 = vmatprep.subr.mxu0 0.0
    %269 = vmatpush1.msra.mxu0 0.0
    %270 = vmatprep.subr.mxu0 0.0
    %271 = vmatpush1.msra.mxu0 0.0
    %272 = vmatprep.subr.mxu0 0.0
    %273 = vmatpush1.msra.mxu0 0.0
    %274 = vmatprep.subr.mxu0 0.0
    %275 = vmatpush1.msra.mxu0 0.0
    %276 = vmatprep.subr.mxu0 0.0
    %277 = vmatpush1.msra.mxu0 0.0
    %278 = vmatprep.subr.mxu0 0.0
    %279 = vmatpush1.msra.mxu0 0.0
    %280 = vmatprep.subr.mxu0 0.0
    %281 = vmatpush1.msra.mxu0 0.0
    %282 = vmatprep.subr.mxu0 0.0
    %283 = vmatpush1.msra.mxu0 0.0
    %284 = vmatprep.subr.mxu0 0.0
    %285 = vmatpush1.msra.mxu0 0.0
    %286 = vmatprep.subr.mxu0 0.0
    %287 = vmatpush1.msra.mxu0 0.0
    %288 = vmatprep.subr.mxu0 0.0
    %289 = vmatpush1.msra.mxu0 0.0
    %290 = vmatprep.subr.mxu0 0.0
    %291 = vmatpush1.msra.mxu0 0.0
    %292 = vmatprep.subr.mxu0 0.0
    %293 = vmatpush1.msra.mxu0 0.0
    %294 = vmatprep.subr.mxu0 0.0
    %295 = vmatpush1.msra.mxu0 0.0
    %296 = vmatprep.subr.mxu0 %v256
    %297 = vmatpush1.msra.mxu0 %v255
    %298 = vmatprep.subr.mxu0 %v254
    %299 = vmatpush1.msra.mxu0 %v253
    %300 = vmatprep.subr.mxu0 0.0
    %301 = vmatpush2.msra.mxu0 0.0
    %302 = vmatprep.subr.mxu0 0.0
    %303 = vmatpush2.msra.mxu0 0.0
    %304 = vmatprep.subr.mxu0 0.0
    %305 = vmatpush2.msra.mxu0 0.0
    %306 = vmatprep.subr.mxu0 0.0
    %307 = vmatpush2.msra.mxu0 0.0
    %308 = vmatprep.subr.mxu0 0.0
    %309 = vmatpush2.msra.mxu0 0.0
    %310 = vmatprep.subr.mxu0 0.0
    %311 = vmatpush2.msra.mxu0 0.0
    %312 = vmatprep.subr.mxu0 0.0
    %313 = vmatpush2.msra.mxu0 0.0
    %314 = vmatprep.subr.mxu0 0.0
    %315 = vmatpush2.msra.mxu0 0.0
    %316 = vmatprep.subr.mxu0 0.0
    %317 = vmatpush2.msra.mxu0 0.0
    %318 = vmatprep.subr.mxu0 0.0
    %319 = vmatpush2.msra.mxu0 0.0
    %320 = vmatprep.subr.mxu0 0.0
    %321 = vmatpush2.msra.mxu0 0.0
    %322 = vmatprep.subr.mxu0 0.0
    %323 = vmatpush2.msra.mxu0 0.0
    %324 = vmatprep.subr.mxu0 0.0
    %325 = vmatpush2.msra.mxu0 0.0
    %326 = vmatprep.subr.mxu0 0.0
    %327 = vmatpush2.msra.mxu0 0.0
    %328 = vmatprep.subr.mxu0 0.0
    %329 = vmatpush2.msra.mxu0 0.0
    %330 = vmatprep.subr.mxu0 0.0
    %331 = vmatpush2.msra.mxu0 0.0
    %332 = vmatprep.mubr.f32.mxu0 0.0
    %333 = vmatmul.mubr.f32.gmra.mxu0 %v266
    %v334 = vpop.f32.mrf.mxu0
    %v335 = vadd.f32 %v262, %v334
    %v336 = vpop.f32.mrf.mxu0
    %v337 = vadd.f32 %v262, %v336
    %338 = vdwg.mxu0
    %v339 = vmax.f32 %v335, 0.0
    %v340 = vmax.f32 %v337, 0.0
    %v341 = vld [vmem:[%s5] sm:$0x3]
    %v342 = vld [vmem:[%s6] sm:$0x3]
    %344 = vset.pattern.permute.xlu0 0
    %345 = vperm.xlu0 %344, %v342
    %v346 = vpop.permute.xlu0 %345
    %vm348 = vcmask 64512
    %v350 = vsel %vm348, %v341, 0
    %352 = vmatprep.subr.mxu0 0.0
    %353 = vmatpush1.msra.mxu0 0.0
    %354 = vmatprep.subr.mxu0 0.0
    %355 = vmatpush1.msra.mxu0 0.0
    %356 = vmatprep.subr.mxu0 0.0
    %357 = vmatpush1.msra.mxu0 0.0
    %358 = vmatprep.subr.mxu0 0.0
    %359 = vmatpush1.msra.mxu0 0.0
    %360 = vmatprep.subr.mxu0 0.0
    %361 = vmatpush1.msra.mxu0 0.0
    %362 = vmatprep.subr.mxu0 0.0
    %363 = vmatpush1.msra.mxu0 0.0
    %364 = vmatprep.subr.mxu0 0.0
    %365 = vmatpush1.msra.mxu0 0.0
    %366 = vmatprep.subr.mxu0 0.0
    %367 = vmatpush1.msra.mxu0 0.0
    %368 = vmatprep.subr.mxu0 0.0
    %369 = vmatpush1.msra.mxu0 0.0
    %370 = vmatprep.subr.mxu0 0.0
    %371 = vmatpush1.msra.mxu0 0.0
    %372 = vmatprep.subr.mxu0 0.0
    %373 = vmatpush1.msra.mxu0 0.0
    %374 = vmatprep.subr.mxu0 0.0
    %375 = vmatpush1.msra.mxu0 0.0
    %376 = vmatprep.subr.mxu0 0.0
    %377 = vmatpush1.msra.mxu0 0.0
    %378 = vmatprep.subr.mxu0 0.0
    %379 = vmatpush1.msra.mxu0 0.0
    %380 = vmatprep.subr.mxu0 0.0
    %381 = vmatpush1.msra.mxu0 0.0
    %382 = vmatprep.subr.mxu0 %v340
    %383 = vmatpush1.msra.mxu0 %v339
    %384 = vmatprep.subr.mxu0 0.0
    %385 = vmatpush2.msra.mxu0 0.0
    %386 = vmatprep.subr.mxu0 0.0
    %387 = vmatpush2.msra.mxu0 0.0
    %388 = vmatprep.subr.mxu0 0.0
    %389 = vmatpush2.msra.mxu0 0.0
    %390 = vmatprep.subr.mxu0 0.0
    %391 = vmatpush2.msra.mxu0 0.0
    %392 = vmatprep.subr.mxu0 0.0
    %393 = vmatpush2.msra.mxu0 0.0
    %394 = vmatprep.subr.mxu0 0.0
    %395 = vmatpush2.msra.mxu0 0.0
    %396 = vmatprep.subr.mxu0 0.0
    %397 = vmatpush2.msra.mxu0 0.0
    %398 = vmatprep.subr.mxu0 0.0
    %399 = vmatpush2.msra.mxu0 0.0
    %400 = vmatprep.subr.mxu0 0.0
    %401 = vmatpush2.msra.mxu0 0.0
    %402 = vmatprep.subr.mxu0 0.0
    %403 = vmatpush2.msra.mxu0 0.0
    %404 = vmatprep.subr.mxu0 0.0
    %405 = vmatpush2.msra.mxu0 0.0
    %406 = vmatprep.subr.mxu0 0.0
    %407 = vmatpush2.msra.mxu0 0.0
    %408 = vmatprep.subr.mxu0 0.0
    %409 = vmatpush2.msra.mxu0 0.0
    %410 = vmatprep.subr.mxu0 0.0
    %411 = vmatpush2.msra.mxu0 0.0
    %412 = vmatprep.subr.mxu0 0.0
    %413 = vmatpush2.msra.mxu0 0.0
    %414 = vmatprep.subr.mxu0 0.0
    %415 = vmatpush2.msra.mxu0 0.0
    %416 = vmatprep.mubr.f32.mxu0 0.0
    %417 = vmatmul.mubr.f32.gmra.mxu0 %v350
    %v418 = vpop.f32.mrf.mxu0
    %v419 = vadd.f32 %v346, %v418
    %v420 = vpop.f32.mrf.mxu0
    %v421 = vadd.f32 %v346, %v420
    %422 = vdwg.mxu0
    %vm423 = vcmask 1041408
    %v424 = vsel %vm423, %v419, -inf
    %v425 = vrot.slane %v424, 4
    %v426 = vmax.f32 %v424, %v425
    %v427 = vrot.slane %v426, 2
    %v428 = vmax.f32 %v426, %v427
    %v429 = vrot.slane %v428, 1
    %v430 = vmax.f32 %v428, %v429
    %v431 = vsel %vm423, %v421, -inf
    %v432 = vrot.slane %v431, 4
    %v433 = vmax.f32 %v431, %v432
    %v434 = vrot.slane %v433, 2
    %v435 = vmax.f32 %v433, %v434
    %v436 = vrot.slane %v435, 1
    %v437 = vmax.f32 %v435, %v436
    %v438 = vsub.f32 %v419, %v430
    %v439 = vsub.f32 %v421, %v437
    %v440 = vmul.f32 %v438, 1.442695
    %v441 = vpow.pop %v440
    %v442 = vmul.f32 %v439, 1.442695
    %v443 = vpow.pop %v442
    %v444 = vsel %vm423, %v441, 0.0
    %v445 = vrot.slane %v444, 4
    %v446 = vadd.f32 %v444, %v445
    %v447 = vrot.slane %v446, 2
    %v448 = vadd.f32 %v446, %v447
    %v449 = vrot.slane %v448, 1
    %v450 = vadd.f32 %v448, %v449
    %v451 = vsel %vm423, %v443, 0.0
    %v452 = vrot.slane %v451, 4
    %v453 = vadd.f32 %v451, %v452
    %v454 = vrot.slane %v453, 2
    %v455 = vadd.f32 %v453, %v454
    %v456 = vrot.slane %v455, 1
    %v457 = vadd.f32 %v455, %v456
    %v458 = vrcp.pop %v450
    %v459 = vmul.f32 %v441, %v458
    %v460 = vrcp.pop %v457
    %v461 = vmul.f32 %v443, %v460
    %v464 = vcombine.low %v459, %v461
    %v466 = vunpack.c.l.s4 1983009808
    %v467 = vunpack.c.0.s8 %v466
    %v468 = vlaneseq
    %v469 = vshrl.u32 %v468, 7
    %v470 = vsub.s32 %v467, %v469
    %v471 = vrot.slane %v464, %v470
    %473 = vst [vmem:[#allocation2] sm:$0xf] %v471
    // Predicated region
    $region30: #{mlp_policy_relu.1} parent=1 // pred_check
      _
    $region31: #{mlp_policy_relu.1} parent=1 // pred_check_branch
      %475 = sbr.rel (0) target = $region33
    $region32: #{mlp_policy_relu.1} parent=1 // pred_region
      %s477 = ssub.s32 64, 32
      %478 = vsyncadd [#allocation3], %s477
      %s480 = sshll.u32 [#allocation2], 4
      %s481 = int_to_ptr.vmem [resolvable:$true] %s480
      %483 = dma.vmem_to_hbm [thread:$0]  %s481, 32, %s7, [#allocation3]
    $region33: #{mlp_policy_relu.1} parent=1 // pred_fallthru
      _
    // Predicated region
    $region34: #{mlp_policy_relu.1} parent=1 // pred_check
      _
    $region35: #{mlp_policy_relu.1} parent=1 // pred_check_branch
      %485 = sbr.rel (0) target = $region37
    $region36: #{mlp_policy_relu.1} parent=1 // pred_region
      %486 = dma.done [#allocation3], 64
    $region37: #{mlp_policy_relu.1} parent=1 // pred_fallthru
      _
    %487 = vsyncpa [#allocation3], 1

</llo_original>
